<compile_context>
chip_gen: v5e
topology: v5e:2x2
jax: 0.10.0
libtpu: 0.0.40
codegen_flags: <defaults>
</compile_context>

<pallas_src>
import math
import numpy as np
import jax
import jax.numpy as jnp
from jax.experimental import pallas as pl
from jax.experimental.pallas import tpu as pltpu

HIDDEN = 128            # 2**7, module default
N_HIDDEN_LAYERS = 6     # len(hidden_sizes) - 1
BN_EPS = 1e-5
SUBLANE_QUANTUM = 16    # covers bf16 (16-row) and f32 (8-row) sublane packing


def _round_up(n, m):
    return ((n + m - 1) // m) * m


# ----------------------------- Pallas kernel --------------------------------
def tabpfn_kernel(x_ref,
                  w_in_ref, t_in_ref,
                  w_hid_ref, t_hid_ref,
                  w_out_ref, t_out_ref,
                  o_ref):
    cdt = w_in_ref.dtype  # compute dtype of the MXU inputs (bf16 by default)

    # Input layer: Linear (BN scale folded into W) -> + shift -> ReLU (f32 accum/VPU)
    h = jnp.dot(x_ref[...], w_in_ref[...], preferred_element_type=jnp.float32)
    h = jnp.maximum(h + t_in_ref[...], 0.0)

    # 6 hidden layers (all HIDDEN x HIDDEN), statically unrolled MXU matmuls
    for i in range(N_HIDDEN_LAYERS):
        h = jnp.dot(h.astype(cdt), w_hid_ref[i], preferred_element_type=jnp.float32)
        h = jnp.maximum(h + t_hid_ref[i], 0.0)

    # Output layer: Linear -> + shift, no ReLU.  Narrow (output_size-wide) f32 store.
    h = jnp.dot(h.astype(cdt), w_out_ref[...], preferred_element_type=jnp.float32)
    o_ref[...] = (h + t_out_ref[...]).astype(o_ref.dtype)


# ------------------------------ batch tiling ---------------------------------
def _pick_batch_tiling(batch, tb_max):
    tb = min(tb_max, _round_up(max(batch, 1), SUBLANE_QUANTUM))
    batch_p = _round_up(max(batch, 1), tb)
    # v7x has two TensorCores: if the whole (large) batch fits one tile, split it in
    # two so dimension_semantics=("parallel",) gives both cores work.
    if batch_p // tb == 1 and tb >= 512:
        tb = _round_up((tb + 1) // 2, SUBLANE_QUANTUM)
        batch_p = _round_up(max(batch, 1), tb)
    return tb, batch_p


def tabpfn_forward(x, kparams, *, tb=1024):
    """Returns (batch, output_size) float32."""
    (w_in, t_in, w_hid, t_hid, w_out, t_out) = kparams
    batch, in_dim = x.shape
    out_dim = w_out.shape[1]

    tb_eff, batch_p = _pick_batch_tiling(batch, tb)

    x = x.astype(w_in.dtype)
    if batch_p != batch:
        x = jnp.pad(x, ((0, batch_p - batch), (0, 0)))

    grid = (batch_p // tb_eff,)
    const2 = lambda b: (0, 0)
    const3 = lambda b: (0, 0, 0)

    flops = 2 * batch_p * (in_dim * HIDDEN
                           + N_HIDDEN_LAYERS * HIDDEN * HIDDEN
                           + HIDDEN * out_dim)
    w_itemsize = jnp.dtype(w_in.dtype).itemsize
    weight_bytes = w_itemsize * (w_in.size + w_hid.size + w_out.size) \
        + 4 * (t_in.size + t_hid.size + t_out.size)
    bytes_accessed = (jnp.dtype(x.dtype).itemsize * batch_p * in_dim
                      + 4 * batch_p * out_dim + weight_bytes)

    out = pl.pallas_call(
        tabpfn_kernel,
        out_shape=jax.ShapeDtypeStruct((batch_p, out_dim), jnp.float32),
        grid_spec=pltpu.PrefetchScalarGridSpec(
            num_scalar_prefetch=0,
            grid=grid,
            in_specs=[
                # activations: tiled along the batch grid axis (double-buffered)
                pl.BlockSpec((tb_eff, in_dim), lambda b: (b, 0)),
                # weights / shifts: constant index_map -> stay VMEM-resident
                pl.BlockSpec((in_dim, HIDDEN), const2),
                pl.BlockSpec((1, HIDDEN), const2),
                pl.BlockSpec((N_HIDDEN_LAYERS, HIDDEN, HIDDEN), const3),
                pl.BlockSpec((N_HIDDEN_LAYERS, 1, HIDDEN), const3),
                pl.BlockSpec((HIDDEN, out_dim), const2),
                pl.BlockSpec((1, out_dim), const2),
            ],
            out_specs=pl.BlockSpec((tb_eff, out_dim), lambda b: (b, 0)),
        ),
        compiler_params=pltpu.CompilerParams(
            dimension_semantics=("parallel",)),
        cost_estimate=pl.CostEstimate(
            flops=flops, transcendentals=0, bytes_accessed=bytes_accessed),
    )(x, w_in, t_in, w_hid, t_hid, w_out, t_out)
    return out[:batch]


# --------------------------- parameter construction --------------------------
def xavier_normal(key, fan_in, fan_out, gain=1.0):
    std = gain * math.sqrt(2.0 / (fan_in + fan_out))
    return jax.random.normal(key, (fan_in, fan_out), dtype=jnp.float32) * std


def linear_bias(key, fan_in, fan_out):
    bound = 1.0 / math.sqrt(fan_in)
    return jax.random.uniform(key, (fan_out,), jnp.float32, -bound, bound)


def fold_bn_into_linear(w, b, gamma, beta, running_mean, running_var):
    """Fold Linear bias + eval-mode BatchNorm into (scaled weights, additive shift)."""
    scale = gamma / jnp.sqrt(running_var + BN_EPS)          # per output column
    w_folded = w * scale[None, :]
    t_folded = beta + (b - running_mean) * scale
    return w_folded.astype(jnp.float32), t_folded.astype(jnp.float32)


def init_params(key, input_size, output_size, *, dtype=jnp.bfloat16):
    hidden_sizes = [HIDDEN] * (N_HIDDEN_LAYERS + 1)
    keys = jax.random.split(key, 2 * (2 + N_HIDDEN_LAYERS))
    ki = iter(range(len(keys)))

    def bn_defaults(dim):
        return (jnp.ones((dim,), jnp.float32), jnp.zeros((dim,), jnp.float32),
                jnp.zeros((dim,), jnp.float32), jnp.ones((dim,), jnp.float32))

    # input layer
    w = xavier_normal(keys[next(ki)], input_size, hidden_sizes[0])
    b = linear_bias(keys[next(ki)], input_size, hidden_sizes[0])
    w_in, t_in = fold_bn_into_linear(w, b, *bn_defaults(hidden_sizes[0]))

    # hidden layers
    w_h, t_h = [], []
    for i in range(N_HIDDEN_LAYERS):
        w = xavier_normal(keys[next(ki)], hidden_sizes[i], hidden_sizes[i + 1])
        b = linear_bias(keys[next(ki)], hidden_sizes[i], hidden_sizes[i + 1])
        wf, tf = fold_bn_into_linear(w, b, *bn_defaults(hidden_sizes[i + 1]))
        w_h.append(wf); t_h.append(tf)
    w_hid = jnp.stack(w_h)                                   # (6, 128, 128)
    t_hid = jnp.stack(t_h)[:, None, :]                       # (6, 1, 128)

    # output layer (kept at its true width; narrow output block is written directly)
    w = xavier_normal(keys[next(ki)], hidden_sizes[-1], output_size)
    b = linear_bias(keys[next(ki)], hidden_sizes[-1], output_size)
    w_out, t_out = fold_bn_into_linear(w, b, *bn_defaults(output_size))

    # MXU inputs in `dtype` (bf16 by default); additive shifts stay f32 (VPU work is f32).
    return (w_in.astype(dtype), t_in[None, :],
            w_hid.astype(dtype), t_hid,
            w_out.astype(dtype), t_out[None, :])


# ------------------------------ plain-JAX reference --------------------------
def tabpfn_reference(x, kparams):
    """Mirror of the kernel math (same dtype casts, f32 accumulation)."""
    (w_in, t_in, w_hid, t_hid, w_out, t_out) = kparams
    cdt = w_in.dtype
    h = jnp.dot(x.astype(cdt), w_in, preferred_element_type=jnp.float32)
    h = jnp.maximum(h + t_in, 0.0)
    for i in range(N_HIDDEN_LAYERS):
        h = jnp.dot(h.astype(cdt), w_hid[i], preferred_element_type=jnp.float32)
        h = jnp.maximum(h + t_hid[i], 0.0)
    h = jnp.dot(h.astype(cdt), w_out, preferred_element_type=jnp.float32)
    return h + t_out


# ------------------------------------ main ------------------------------------
if __name__ == "__main__":
    input_size, output_size = 16, 8

    key = jax.random.PRNGKey(0)
    k_x1, k_x2, k_p = jax.random.split(key, 3)
    kparams = init_params(k_p, input_size, output_size)

    # Small single-tile case (tile shrinks to the actual batch; no 128-row padding).
    batch = 32
    x = jax.random.normal(k_x1, (batch, input_size), dtype=jnp.float32)
    out = jax.block_until_ready(tabpfn_forward(x, kparams))
    ref = jax.block_until_ready(tabpfn_reference(x, kparams))
    assert out.shape == (batch, output_size)
    np.testing.assert_allclose(np.asarray(out), np.asarray(ref), rtol=2e-3, atol=2e-3)

    # Multi-tile case: exercises the batch grid, double-buffered pipeline and pad/slice.
    batch2 = 1040
    x2 = jax.random.normal(k_x2, (batch2, input_size), dtype=jnp.float32)
    out2 = jax.block_until_ready(tabpfn_forward(x2, kparams))
    ref2 = jax.block_until_ready(tabpfn_reference(x2, kparams))
    assert out2.shape == (batch2, output_size)
    np.testing.assert_allclose(np.asarray(out2), np.asarray(ref2), rtol=2e-3, atol=2e-3)

    print("KERNEL_OK")
</pallas_src>

<mosaic_0001>
module attributes {stable_mosaic.version = 11 : i64} {
  func.func @tabpfn_kernel(%arg0: i32, %arg1: memref<32x16xbf16, #tpu.memory_space<vmem>>, %arg2: memref<16x128xbf16, #tpu.memory_space<vmem>>, %arg3: memref<1x128xf32, #tpu.memory_space<vmem>>, %arg4: memref<6x128x128xbf16, #tpu.memory_space<vmem>>, %arg5: memref<6x1x128xf32, #tpu.memory_space<vmem>>, %arg6: memref<128x8xbf16, #tpu.memory_space<vmem>>, %arg7: memref<1x8xf32, #tpu.memory_space<vmem>>, %arg8: memref<32x8xf32, #tpu.memory_space<vmem>>) attributes {dimension_semantics = [#tpu.dimension_semantics<parallel>], iteration_bounds = array<i64: 1>, scalar_prefetch = 0 : i64, scratch_operands = 0 : i64, tpu.core_type = #tpu.core_type<tc>, window_params = [{transform_indices = @transform_0, window_bounds = array<i64: 32, 16>}, {pipeline_mode = #tpu.pipeline_mode<synchronous>, transform_indices = @transform_1, window_bounds = array<i64: 16, 128>}, {pipeline_mode = #tpu.pipeline_mode<synchronous>, transform_indices = @transform_2, window_bounds = array<i64: 1, 128>}, {pipeline_mode = #tpu.pipeline_mode<synchronous>, transform_indices = @transform_3, window_bounds = array<i64: 6, 128, 128>}, {pipeline_mode = #tpu.pipeline_mode<synchronous>, transform_indices = @transform_4, window_bounds = array<i64: 6, 1, 128>}, {pipeline_mode = #tpu.pipeline_mode<synchronous>, transform_indices = @transform_5, window_bounds = array<i64: 128, 8>}, {pipeline_mode = #tpu.pipeline_mode<synchronous>, transform_indices = @transform_6, window_bounds = array<i64: 1, 8>}, {transform_indices = @transform_7, window_bounds = array<i64: 32, 8>}]} {
    %c0 = arith.constant 0 : index
    %c0_0 = arith.constant 0 : index
    %0 = vector.load %arg1[%c0, %c0_0] : memref<32x16xbf16, #tpu.memory_space<vmem>>, vector<32x16xbf16>
    %c0_1 = arith.constant 0 : index
    %c0_2 = arith.constant 0 : index
    %1 = vector.load %arg2[%c0_1, %c0_2] : memref<16x128xbf16, #tpu.memory_space<vmem>>, vector<16x128xbf16>
    %cst = arith.constant dense<0.000000e+00> : vector<32x128xf32>
    %2 = tpu.matmul %0, %1, %cst {dimension_numbers = #tpu.dot_dimension_numbers<[1], [0], [0], [1], [0, 0, 1, 1], [], []>} : vector<32x16xbf16>, vector<16x128xbf16>, vector<32x128xf32> -> vector<32x128xf32>
    %c0_3 = arith.constant 0 : index
    %c0_4 = arith.constant 0 : index
    %3 = vector.load %arg3[%c0_3, %c0_4] : memref<1x128xf32, #tpu.memory_space<vmem>>, vector<1x128xf32>
    %4 = vector.broadcast %3 : vector<1x128xf32> to vector<32x128xf32>
    %5 = arith.addf %2, %4 : vector<32x128xf32>
    %cst_5 = arith.constant 0.000000e+00 : f32
    %6 = vector.broadcast %cst_5 : f32 to vector<32x128xf32>
    %7 = arith.maximumf %5, %6 : vector<32x128xf32>
    %8 = arith.truncf %7 : vector<32x128xf32> to vector<32x128xbf16>
    %c0_6 = arith.constant 0 : index
    %c0_7 = arith.constant 0 : index
    %c0_8 = arith.constant 0 : index
    %9 = vector.load %arg4[%c0_6, %c0_7, %c0_8] : memref<6x128x128xbf16, #tpu.memory_space<vmem>>, vector<1x128x128xbf16>
    %10 = vector.shape_cast %9 : vector<1x128x128xbf16> to vector<128x128xbf16>
    %cst_9 = arith.constant dense<0.000000e+00> : vector<32x128xf32>
    %11 = tpu.matmul %8, %10, %cst_9 {dimension_numbers = #tpu.dot_dimension_numbers<[1], [0], [0], [1], [0, 0, 1, 1], [], []>} : vector<32x128xbf16>, vector<128x128xbf16>, vector<32x128xf32> -> vector<32x128xf32>
    %c0_10 = arith.constant 0 : index
    %c0_11 = arith.constant 0 : index
    %c0_12 = arith.constant 0 : index
    %12 = vector.load %arg5[%c0_10, %c0_11, %c0_12] : memref<6x1x128xf32, #tpu.memory_space<vmem>>, vector<1x1x128xf32>
    %13 = vector.shape_cast %12 : vector<1x1x128xf32> to vector<1x128xf32>
    %14 = vector.broadcast %13 : vector<1x128xf32> to vector<32x128xf32>
    %15 = arith.addf %11, %14 : vector<32x128xf32>
    %cst_13 = arith.constant 0.000000e+00 : f32
    %16 = vector.broadcast %cst_13 : f32 to vector<32x128xf32>
    %17 = arith.maximumf %15, %16 : vector<32x128xf32>
    %18 = arith.truncf %17 : vector<32x128xf32> to vector<32x128xbf16>
    %c1 = arith.constant 1 : index
    %c0_14 = arith.constant 0 : index
    %c0_15 = arith.constant 0 : index
    %19 = vector.load %arg4[%c1, %c0_14, %c0_15] : memref<6x128x128xbf16, #tpu.memory_space<vmem>>, vector<1x128x128xbf16>
    %20 = vector.shape_cast %19 : vector<1x128x128xbf16> to vector<128x128xbf16>
    %cst_16 = arith.constant dense<0.000000e+00> : vector<32x128xf32>
    %21 = tpu.matmul %18, %20, %cst_16 {dimension_numbers = #tpu.dot_dimension_numbers<[1], [0], [0], [1], [0, 0, 1, 1], [], []>} : vector<32x128xbf16>, vector<128x128xbf16>, vector<32x128xf32> -> vector<32x128xf32>
    %c1_17 = arith.constant 1 : index
    %c0_18 = arith.constant 0 : index
    %c0_19 = arith.constant 0 : index
    %22 = vector.load %arg5[%c1_17, %c0_18, %c0_19] : memref<6x1x128xf32, #tpu.memory_space<vmem>>, vector<1x1x128xf32>
    %23 = vector.shape_cast %22 : vector<1x1x128xf32> to vector<1x128xf32>
    %24 = vector.broadcast %23 : vector<1x128xf32> to vector<32x128xf32>
    %25 = arith.addf %21, %24 : vector<32x128xf32>
    %cst_20 = arith.constant 0.000000e+00 : f32
    %26 = vector.broadcast %cst_20 : f32 to vector<32x128xf32>
    %27 = arith.maximumf %25, %26 : vector<32x128xf32>
    %28 = arith.truncf %27 : vector<32x128xf32> to vector<32x128xbf16>
    %c2 = arith.constant 2 : index
    %c0_21 = arith.constant 0 : index
    %c0_22 = arith.constant 0 : index
    %29 = vector.load %arg4[%c2, %c0_21, %c0_22] : memref<6x128x128xbf16, #tpu.memory_space<vmem>>, vector<1x128x128xbf16>
    %30 = vector.shape_cast %29 : vector<1x128x128xbf16> to vector<128x128xbf16>
    %cst_23 = arith.constant dense<0.000000e+00> : vector<32x128xf32>
    %31 = tpu.matmul %28, %30, %cst_23 {dimension_numbers = #tpu.dot_dimension_numbers<[1], [0], [0], [1], [0, 0, 1, 1], [], []>} : vector<32x128xbf16>, vector<128x128xbf16>, vector<32x128xf32> -> vector<32x128xf32>
    %c2_24 = arith.constant 2 : index
    %c0_25 = arith.constant 0 : index
    %c0_26 = arith.constant 0 : index
    %32 = vector.load %arg5[%c2_24, %c0_25, %c0_26] : memref<6x1x128xf32, #tpu.memory_space<vmem>>, vector<1x1x128xf32>
    %33 = vector.shape_cast %32 : vector<1x1x128xf32> to vector<1x128xf32>
    %34 = vector.broadcast %33 : vector<1x128xf32> to vector<32x128xf32>
    %35 = arith.addf %31, %34 : vector<32x128xf32>
    %cst_27 = arith.constant 0.000000e+00 : f32
    %36 = vector.broadcast %cst_27 : f32 to vector<32x128xf32>
    %37 = arith.maximumf %35, %36 : vector<32x128xf32>
    %38 = arith.truncf %37 : vector<32x128xf32> to vector<32x128xbf16>
    %c3 = arith.constant 3 : index
    %c0_28 = arith.constant 0 : index
    %c0_29 = arith.constant 0 : index
    %39 = vector.load %arg4[%c3, %c0_28, %c0_29] : memref<6x128x128xbf16, #tpu.memory_space<vmem>>, vector<1x128x128xbf16>
    %40 = vector.shape_cast %39 : vector<1x128x128xbf16> to vector<128x128xbf16>
    %cst_30 = arith.constant dense<0.000000e+00> : vector<32x128xf32>
    %41 = tpu.matmul %38, %40, %cst_30 {dimension_numbers = #tpu.dot_dimension_numbers<[1], [0], [0], [1], [0, 0, 1, 1], [], []>} : vector<32x128xbf16>, vector<128x128xbf16>, vector<32x128xf32> -> vector<32x128xf32>
    %c3_31 = arith.constant 3 : index
    %c0_32 = arith.constant 0 : index
    %c0_33 = arith.constant 0 : index
    %42 = vector.load %arg5[%c3_31, %c0_32, %c0_33] : memref<6x1x128xf32, #tpu.memory_space<vmem>>, vector<1x1x128xf32>
    %43 = vector.shape_cast %42 : vector<1x1x128xf32> to vector<1x128xf32>
    %44 = vector.broadcast %43 : vector<1x128xf32> to vector<32x128xf32>
    %45 = arith.addf %41, %44 : vector<32x128xf32>
    %cst_34 = arith.constant 0.000000e+00 : f32
    %46 = vector.broadcast %cst_34 : f32 to vector<32x128xf32>
    %47 = arith.maximumf %45, %46 : vector<32x128xf32>
    %48 = arith.truncf %47 : vector<32x128xf32> to vector<32x128xbf16>
    %c4 = arith.constant 4 : index
    %c0_35 = arith.constant 0 : index
    %c0_36 = arith.constant 0 : index
    %49 = vector.load %arg4[%c4, %c0_35, %c0_36] : memref<6x128x128xbf16, #tpu.memory_space<vmem>>, vector<1x128x128xbf16>
    %50 = vector.shape_cast %49 : vector<1x128x128xbf16> to vector<128x128xbf16>
    %cst_37 = arith.constant dense<0.000000e+00> : vector<32x128xf32>
    %51 = tpu.matmul %48, %50, %cst_37 {dimension_numbers = #tpu.dot_dimension_numbers<[1], [0], [0], [1], [0, 0, 1, 1], [], []>} : vector<32x128xbf16>, vector<128x128xbf16>, vector<32x128xf32> -> vector<32x128xf32>
    %c4_38 = arith.constant 4 : index
    %c0_39 = arith.constant 0 : index
    %c0_40 = arith.constant 0 : index
    %52 = vector.load %arg5[%c4_38, %c0_39, %c0_40] : memref<6x1x128xf32, #tpu.memory_space<vmem>>, vector<1x1x128xf32>
    %53 = vector.shape_cast %52 : vector<1x1x128xf32> to vector<1x128xf32>
    %54 = vector.broadcast %53 : vector<1x128xf32> to vector<32x128xf32>
    %55 = arith.addf %51, %54 : vector<32x128xf32>
    %cst_41 = arith.constant 0.000000e+00 : f32
    %56 = vector.broadcast %cst_41 : f32 to vector<32x128xf32>
    %57 = arith.maximumf %55, %56 : vector<32x128xf32>
    %58 = arith.truncf %57 : vector<32x128xf32> to vector<32x128xbf16>
    %c5 = arith.constant 5 : index
    %c0_42 = arith.constant 0 : index
    %c0_43 = arith.constant 0 : index
    %59 = vector.load %arg4[%c5, %c0_42, %c0_43] : memref<6x128x128xbf16, #tpu.memory_space<vmem>>, vector<1x128x128xbf16>
    %60 = vector.shape_cast %59 : vector<1x128x128xbf16> to vector<128x128xbf16>
    %cst_44 = arith.constant dense<0.000000e+00> : vector<32x128xf32>
    %61 = tpu.matmul %58, %60, %cst_44 {dimension_numbers = #tpu.dot_dimension_numbers<[1], [0], [0], [1], [0, 0, 1, 1], [], []>} : vector<32x128xbf16>, vector<128x128xbf16>, vector<32x128xf32> -> vector<32x128xf32>
    %c5_45 = arith.constant 5 : index
    %c0_46 = arith.constant 0 : index
    %c0_47 = arith.constant 0 : index
    %62 = vector.load %arg5[%c5_45, %c0_46, %c0_47] : memref<6x1x128xf32, #tpu.memory_space<vmem>>, vector<1x1x128xf32>
    %63 = vector.shape_cast %62 : vector<1x1x128xf32> to vector<1x128xf32>
    %64 = vector.broadcast %63 : vector<1x128xf32> to vector<32x128xf32>
    %65 = arith.addf %61, %64 : vector<32x128xf32>
    %cst_48 = arith.constant 0.000000e+00 : f32
    %66 = vector.broadcast %cst_48 : f32 to vector<32x128xf32>
    %67 = arith.maximumf %65, %66 : vector<32x128xf32>
    %68 = arith.truncf %67 : vector<32x128xf32> to vector<32x128xbf16>
    %c0_49 = arith.constant 0 : index
    %c0_50 = arith.constant 0 : index
    %69 = vector.load %arg6[%c0_49, %c0_50] : memref<128x8xbf16, #tpu.memory_space<vmem>>, vector<128x8xbf16>
    %cst_51 = arith.constant dense<0.000000e+00> : vector<32x8xf32>
    %70 = tpu.matmul %68, %69, %cst_51 {dimension_numbers = #tpu.dot_dimension_numbers<[1], [0], [0], [1], [0, 0, 1, 1], [], []>} : vector<32x128xbf16>, vector<128x8xbf16>, vector<32x8xf32> -> vector<32x8xf32>
    %c0_52 = arith.constant 0 : index
    %c0_53 = arith.constant 0 : index
    %71 = vector.load %arg7[%c0_52, %c0_53] : memref<1x8xf32, #tpu.memory_space<vmem>>, vector<1x8xf32>
    %72 = vector.broadcast %71 : vector<1x8xf32> to vector<32x8xf32>
    %73 = arith.addf %70, %72 : vector<32x8xf32>
    %c0_54 = arith.constant 0 : index
    %c0_55 = arith.constant 0 : index
    %74 = vector.load %arg8[%c0_54, %c0_55] : memref<32x8xf32, #tpu.memory_space<vmem>>, vector<32x8xf32>
    tpu.vector_store %arg8[%c0_54, %c0_55], %73 {strides = array<i32>} : memref<32x8xf32, #tpu.memory_space<vmem>>, vector<32x8xf32>,
    return
  }
  func.func @transform_0(%arg0: i32) -> (i32, i32) {
    %c0_i32 = arith.constant 0 : i32
    %c0_i32_0 = arith.constant 0 : i32
    return %arg0, %c0_i32 : i32, i32
  }
  func.func @transform_1(%arg0: i32) -> (i32, i32) {
    %c0_i32 = arith.constant 0 : i32
    %c0_i32_0 = arith.constant 0 : i32
    %c0_i32_1 = arith.constant 0 : i32
    return %c0_i32, %c0_i32_0 : i32, i32
  }
  func.func @transform_2(%arg0: i32) -> (i32, i32) {
    %c0_i32 = arith.constant 0 : i32
    %c0_i32_0 = arith.constant 0 : i32
    %c0_i32_1 = arith.constant 0 : i32
    return %c0_i32, %c0_i32_0 : i32, i32
  }
  func.func @transform_3(%arg0: i32) -> (i32, i32, i32) {
    %c0_i32 = arith.constant 0 : i32
    %c0_i32_0 = arith.constant 0 : i32
    %c0_i32_1 = arith.constant 0 : i32
    %c0_i32_2 = arith.constant 0 : i32
    return %c0_i32, %c0_i32_0, %c0_i32_1 : i32, i32, i32
  }
  func.func @transform_4(%arg0: i32) -> (i32, i32, i32) {
    %c0_i32 = arith.constant 0 : i32
    %c0_i32_0 = arith.constant 0 : i32
    %c0_i32_1 = arith.constant 0 : i32
    %c0_i32_2 = arith.constant 0 : i32
    return %c0_i32, %c0_i32_0, %c0_i32_1 : i32, i32, i32
  }
  func.func @transform_5(%arg0: i32) -> (i32, i32) {
    %c0_i32 = arith.constant 0 : i32
    %c0_i32_0 = arith.constant 0 : i32
    %c0_i32_1 = arith.constant 0 : i32
    return %c0_i32, %c0_i32_0 : i32, i32
  }
  func.func @transform_6(%arg0: i32) -> (i32, i32) {
    %c0_i32 = arith.constant 0 : i32
    %c0_i32_0 = arith.constant 0 : i32
    %c0_i32_1 = arith.constant 0 : i32
    return %c0_i32, %c0_i32_0 : i32, i32
  }
  func.func @transform_7(%arg0: i32) -> (i32, i32) {
    %c0_i32 = arith.constant 0 : i32
    %c0_i32_0 = arith.constant 0 : i32
    return %arg0, %c0_i32 : i32, i32
  }
}

</mosaic_0001>

<llo_original>
// kernel: tpu_custom_call.1
$region0: #{tpu_custom_call.1}
  #allocation0 [shape = 'u32[]', space=smem, size = 0x4, offset = 0x4, fixed_abs, tag = 'smem constant byte address 0x4 - core index']
  #allocation1 [shape = 'u32[72,128]{1,0:T(1,128)}', space=vmem, size = 0x9000, scoped, tag = 'internal scratch']
  %s0 = inlined_call_operand.vmem [shape: bf16[32,16], index: 0, kind: input, shape index: {}]
  %s1 = inlined_call_operand.vmem [shape: bf16[16,128], index: 1, kind: input, shape index: {}]
  %s2 = inlined_call_operand.vmem [shape: f32[1,128], index: 2, kind: input, shape index: {}]
  %s3 = inlined_call_operand.hbm [shape: bf16[6,128,128], index: 3, kind: input, shape index: {}]
  %s4 = inlined_call_operand.vmem [shape: f32[6,1,128], index: 4, kind: input, shape index: {}]
  %s5 = inlined_call_operand.vmem [shape: bf16[128,8], index: 5, kind: input, shape index: {}]
  %s6 = inlined_call_operand.vmem [shape: f32[1,8], index: 6, kind: input, shape index: {}]
  %s7 = inlined_call_operand.vmem [shape: f32[32,8], index: 7, kind: output, shape index: {}]
  %s8 = sld [smem:[#allocation0]]
  $region42: #{tpu_custom_call.1} parent=0
    _
  %s10 = ssub.s32 1, %s8
  %s11 = scalar_select 0, %s10, %s8
  $region1: #{tpu_custom_call.1} parent=0
    #allocation2 [shape = 'u8[196608]{0}', space=vmem, size = 0x30000, scoped, tag = 'input window, operand 3, single buffered']
    #allocation3 [shape = 's32[1]{0}', space=sflag, size = 0x4, scoped, tag = 'scoped memory for tpu_custom_call.1']
    %12 = vsyncpa [#allocation3], 0
    // Predicated region
    $region2: #{tpu_custom_call.1} parent=1 // pred_check
      _
    $region3: #{tpu_custom_call.1} parent=1 // pred_check_branch
      %14 = sbr.rel (0) target = $region5
    $region4: #{tpu_custom_call.1} parent=1 // pred_region
      _
    $region5: #{tpu_custom_call.1} parent=1 // pred_fallthru
      _
    // Predicated region
    $region6: #{tpu_custom_call.1} parent=1 // pred_check
      _
    $region7: #{tpu_custom_call.1} parent=1 // pred_check_branch
      %16 = sbr.rel (0) target = $region9
    $region8: #{tpu_custom_call.1} parent=1 // pred_region
      _
    $region9: #{tpu_custom_call.1} parent=1 // pred_fallthru
      _
    // Predicated region
    $region10: #{tpu_custom_call.1} parent=1 // pred_check
      _
    $region11: #{tpu_custom_call.1} parent=1 // pred_check_branch
      %18 = sbr.rel (0) target = $region13
    $region12: #{tpu_custom_call.1} parent=1 // pred_region
      _
    $region13: #{tpu_custom_call.1} parent=1 // pred_fallthru
      _
    // Predicated region
    $region14: #{tpu_custom_call.1} parent=1 // pred_check
      _
    $region15: #{tpu_custom_call.1} parent=1 // pred_check_branch
      %20 = sbr.rel (0) target = $region17
    $region16: #{tpu_custom_call.1} parent=1 // pred_region
      %22 = vsyncadd [#allocation3], 0
      %s23 = sshll.u32 %s3, 4
      %s24 = int_to_ptr.hbm [resolvable:$true] %s23
      %s25 = sshll.u32 [#allocation2], 4
      %s26 = int_to_ptr.vmem [resolvable:$true] %s25
      %31 = dma.hbm_to_vmem [thread:$0]  %s24, 6144, %s26, [#allocation3], 64, 64, 4
    $region17: #{tpu_custom_call.1} parent=1 // pred_fallthru
      _
    // Predicated region
    $region18: #{tpu_custom_call.1} parent=1 // pred_check
      _
    $region19: #{tpu_custom_call.1} parent=1 // pred_check_branch
      %33 = sbr.rel (0) target = $region21
    $region20: #{tpu_custom_call.1} parent=1 // pred_region
      _
    $region21: #{tpu_custom_call.1} parent=1 // pred_fallthru
      _
    // Predicated region
    $region22: #{tpu_custom_call.1} parent=1 // pred_check
      _
    $region23: #{tpu_custom_call.1} parent=1 // pred_check_branch
      %35 = sbr.rel (0) target = $region25
    $region24: #{tpu_custom_call.1} parent=1 // pred_region
      _
    $region25: #{tpu_custom_call.1} parent=1 // pred_fallthru
      _
    // Predicated region
    $region26: #{tpu_custom_call.1} parent=1 // pred_check
      _
    $region27: #{tpu_custom_call.1} parent=1 // pred_check_branch
      %37 = sbr.rel (0) target = $region29
    $region28: #{tpu_custom_call.1} parent=1 // pred_region
      _
    $region29: #{tpu_custom_call.1} parent=1 // pred_fallthru
      _
    // Predicated region
    $region30: #{tpu_custom_call.1} parent=1 // pred_check
      _
    $region31: #{tpu_custom_call.1} parent=1 // pred_check_branch
      %39 = sbr.rel (0) target = $region33
    $region32: #{tpu_custom_call.1} parent=1 // pred_region
      %41 = dma.done [#allocation3], 6144
    $region33: #{tpu_custom_call.1} parent=1 // pred_fallthru
      _
    %v43 = vld [vmem:[%s0] sm:$0xf]
    %v44 = vld [vmem:[%s0 + $0x4] sm:$0xf]
    %v45 = vld [vmem:[%s0 + $0x8] sm:$0xf]
    %v46 = vld [vmem:[%s0 + $0xc] sm:$0xf]
    %v47 = vld [vmem:[%s1] sm:$0xf]
    %v48 = vld [vmem:[%s1 + $0x4] sm:$0xf]
    %v49 = vld [vmem:[%s2] sm:$0x1]
    %v51 = vperm.slane %v49, 0
    %v57 = vunpack.c.l.b16 %v43
    %v58 = vunpack.c.l.b16 %v44
    %v59 = vunpack.c.l.b16 %v45
    %v60 = vunpack.c.l.b16 %v46
    %v61 = vpack.c.b16 %v58, %v57
    %v62 = vpack.c.b16 %v60, %v59
    %v65 = vunpack.c.l.b16 %v47
    %v66 = vunpack.c.l.b16 %v48
    %v67 = vpack.c.b16 %v66, %v65
    %vm69 = vcmask 130048
    %v71 = vsel %vm69, %v61, 0
    %v74 = vsel %vm69, %v62, 0
    %76 = vmatpush.bf16.msra.mxu0 0
    %77 = vmatpush.bf16.msra.mxu0 0
    %78 = vmatpush.bf16.msra.mxu0 0
    %79 = vmatpush.bf16.msra.mxu0 0
    %80 = vmatpush.bf16.msra.mxu0 0
    %81 = vmatpush.bf16.msra.mxu0 0
    %82 = vmatpush.bf16.msra.mxu0 0
    %83 = vmatpush.bf16.msra.mxu0 %v67
    %84 = vmatmul.bf16.gmra.mxu0 %v71
    %v85 = vpop.f32.mrf.mxu0
    %v86 = vadd.f32 %v51, %v85
    %v87 = vpop.f32.mrf.mxu0
    %v88 = vadd.f32 %v51, %v87
    %89 = vmatmul.bf16.gmra.mxu0 %v74
    %v90 = vpop.f32.mrf.mxu0
    %v91 = vadd.f32 %v51, %v90
    %v92 = vpop.f32.mrf.mxu0
    %v93 = vadd.f32 %v51, %v92
    %94 = vdwg.mxu0
    %v95 = vmax.f32 %v86, 0.0
    %v96 = vmax.f32 %v88, 0.0
    %v97 = vmax.f32 %v91, 0.0
    %v98 = vmax.f32 %v93, 0.0
    %v99 = vpack.c.bf16 %v96, %v95
    %v100 = vpack.c.bf16 %v98, %v97
    %v101 = vld [vmem:[#allocation2] sm:$0xf]
    %v102 = vld [vmem:[#allocation2 + $0x4] sm:$0xf]
    %v103 = vld [vmem:[#allocation2 + $0x8] sm:$0xf]
    %v104 = vld [vmem:[#allocation2 + $0xc] sm:$0xf]
    %v105 = vld [vmem:[#allocation2 + $0x10] sm:$0xf]
    %v106 = vld [vmem:[#allocation2 + $0x14] sm:$0xf]
    %v107 = vld [vmem:[#allocation2 + $0x18] sm:$0xf]
    %v108 = vld [vmem:[#allocation2 + $0x1c] sm:$0xf]
    %v109 = vld [vmem:[#allocation2 + $0x20] sm:$0xf]
    %v110 = vld [vmem:[#allocation2 + $0x24] sm:$0xf]
    %v111 = vld [vmem:[#allocation2 + $0x28] sm:$0xf]
    %v112 = vld [vmem:[#allocation2 + $0x2c] sm:$0xf]
    %v113 = vld [vmem:[#allocation2 + $0x30] sm:$0xf]
    %v114 = vld [vmem:[#allocation2 + $0x34] sm:$0xf]
    %v115 = vld [vmem:[#allocation2 + $0x38] sm:$0xf]
    %v116 = vld [vmem:[#allocation2 + $0x3c] sm:$0xf]
    %v117 = vld [vmem:[%s4] sm:$0x1]
    %v119 = vperm.slane %v117, 0
    %v137 = vunpack.c.l.b16 %v101
    %v138 = vunpack.c.l.b16 %v102
    %v139 = vunpack.c.l.b16 %v103
    %v140 = vunpack.c.l.b16 %v104
    %v141 = vunpack.c.l.b16 %v105
    %v142 = vunpack.c.l.b16 %v106
    %v143 = vunpack.c.l.b16 %v107
    %v144 = vunpack.c.l.b16 %v108
    %v145 = vunpack.c.l.b16 %v109
    %v146 = vunpack.c.l.b16 %v110
    %v147 = vunpack.c.l.b16 %v111
    %v148 = vunpack.c.l.b16 %v112
    %v149 = vunpack.c.l.b16 %v113
    %v150 = vunpack.c.l.b16 %v114
    %v151 = vunpack.c.l.b16 %v115
    %v152 = vunpack.c.l.b16 %v116
    %v153 = vpack.c.b16 %v138, %v137
    %v154 = vpack.c.b16 %v140, %v139
    %v155 = vpack.c.b16 %v142, %v141
    %v156 = vpack.c.b16 %v144, %v143
    %v157 = vpack.c.b16 %v146, %v145
    %v158 = vpack.c.b16 %v148, %v147
    %v159 = vpack.c.b16 %v150, %v149
    %v160 = vpack.c.b16 %v152, %v151
    %169 = vmatpush.bf16.msra.mxu0 %v160
    %170 = vmatpush.bf16.msra.mxu0 %v159
    %171 = vmatpush.bf16.msra.mxu0 %v158
    %172 = vmatpush.bf16.msra.mxu0 %v157
    %173 = vmatpush.bf16.msra.mxu0 %v156
    %174 = vmatpush.bf16.msra.mxu0 %v155
    %175 = vmatpush.bf16.msra.mxu0 %v154
    %176 = vmatpush.bf16.msra.mxu0 %v153
    %177 = vmatmul.bf16.gmra.mxu0 %v99
    %v178 = vpop.f32.mrf.mxu0
    %v179 = vadd.f32 %v119, %v178
    %v180 = vpop.f32.mrf.mxu0
    %v181 = vadd.f32 %v119, %v180
    %182 = vmatmul.bf16.gmra.mxu0 %v100
    %v183 = vpop.f32.mrf.mxu0
    %v184 = vadd.f32 %v119, %v183
    %v185 = vpop.f32.mrf.mxu0
    %v186 = vadd.f32 %v119, %v185
    %187 = vdwg.mxu0
    %v188 = vmax.f32 %v179, 0.0
    %v189 = vmax.f32 %v181, 0.0
    %v190 = vmax.f32 %v184, 0.0
    %v191 = vmax.f32 %v186, 0.0
    %v192 = vpack.c.bf16 %v189, %v188
    %v193 = vpack.c.bf16 %v191, %v190
    %s194 = scalar_lea.vmem [#allocation2], 64
    %v195 = vld [vmem:[%s194] sm:$0xf]
    %v196 = vld [vmem:[%s194 + $0x4] sm:$0xf]
    %v197 = vld [vmem:[%s194 + $0x8] sm:$0xf]
    %v198 = vld [vmem:[%s194 + $0xc] sm:$0xf]
    %v199 = vld [vmem:[%s194 + $0x10] sm:$0xf]
    %v200 = vld [vmem:[%s194 + $0x14] sm:$0xf]
    %v201 = vld [vmem:[%s194 + $0x18] sm:$0xf]
    %v202 = vld [vmem:[%s194 + $0x1c] sm:$0xf]
    %v203 = vld [vmem:[%s194 + $0x20] sm:$0xf]
    %v204 = vld [vmem:[%s194 + $0x24] sm:$0xf]
    %v205 = vld [vmem:[%s194 + $0x28] sm:$0xf]
    %v206 = vld [vmem:[%s194 + $0x2c] sm:$0xf]
    %v207 = vld [vmem:[%s194 + $0x30] sm:$0xf]
    %v208 = vld [vmem:[%s194 + $0x34] sm:$0xf]
    %v209 = vld [vmem:[%s194 + $0x38] sm:$0xf]
    %v210 = vld [vmem:[%s194 + $0x3c] sm:$0xf]
    %s211 = scalar_lea.vmem %s4, 1
    %v212 = vld [vmem:[%s211] sm:$0x1]
    %v214 = vperm.slane %v212, 0
    %v232 = vunpack.c.l.b16 %v195
    %v233 = vunpack.c.l.b16 %v196
    %v234 = vunpack.c.l.b16 %v197
    %v235 = vunpack.c.l.b16 %v198
    %v236 = vunpack.c.l.b16 %v199
    %v237 = vunpack.c.l.b16 %v200
    %v238 = vunpack.c.l.b16 %v201
    %v239 = vunpack.c.l.b16 %v202
    %v240 = vunpack.c.l.b16 %v203
    %v241 = vunpack.c.l.b16 %v204
    %v242 = vunpack.c.l.b16 %v205
    %v243 = vunpack.c.l.b16 %v206
    %v244 = vunpack.c.l.b16 %v207
    %v245 = vunpack.c.l.b16 %v208
    %v246 = vunpack.c.l.b16 %v209
    %v247 = vunpack.c.l.b16 %v210
    %v248 = vpack.c.b16 %v233, %v232
    %v249 = vpack.c.b16 %v235, %v234
    %v250 = vpack.c.b16 %v237, %v236
    %v251 = vpack.c.b16 %v239, %v238
    %v252 = vpack.c.b16 %v241, %v240
    %v253 = vpack.c.b16 %v243, %v242
    %v254 = vpack.c.b16 %v245, %v244
    %v255 = vpack.c.b16 %v247, %v246
    %264 = vmatpush.bf16.msra.mxu0 %v255
    %265 = vmatpush.bf16.msra.mxu0 %v254
    %266 = vmatpush.bf16.msra.mxu0 %v253
    %267 = vmatpush.bf16.msra.mxu0 %v252
    %268 = vmatpush.bf16.msra.mxu0 %v251
    %269 = vmatpush.bf16.msra.mxu0 %v250
    %270 = vmatpush.bf16.msra.mxu0 %v249
    %271 = vmatpush.bf16.msra.mxu0 %v248
    %272 = vmatmul.bf16.gmra.mxu0 %v192
    %v273 = vpop.f32.mrf.mxu0
    %v274 = vadd.f32 %v214, %v273
    %v275 = vpop.f32.mrf.mxu0
    %v276 = vadd.f32 %v214, %v275
    %277 = vmatmul.bf16.gmra.mxu0 %v193
    %v278 = vpop.f32.mrf.mxu0
    %v279 = vadd.f32 %v214, %v278
    %v280 = vpop.f32.mrf.mxu0
    %v281 = vadd.f32 %v214, %v280
    %282 = vdwg.mxu0
    %v283 = vmax.f32 %v274, 0.0
    %v284 = vmax.f32 %v276, 0.0
    %v285 = vmax.f32 %v279, 0.0
    %v286 = vmax.f32 %v281, 0.0
    %v287 = vpack.c.bf16 %v284, %v283
    %v288 = vpack.c.bf16 %v286, %v285
    %s289 = scalar_lea.vmem [#allocation2], 128
    %v290 = vld [vmem:[%s289] sm:$0xf]
    %v291 = vld [vmem:[%s289 + $0x4] sm:$0xf]
    %v292 = vld [vmem:[%s289 + $0x8] sm:$0xf]
    %v293 = vld [vmem:[%s289 + $0xc] sm:$0xf]
    %v294 = vld [vmem:[%s289 + $0x10] sm:$0xf]
    %v295 = vld [vmem:[%s289 + $0x14] sm:$0xf]
    %v296 = vld [vmem:[%s289 + $0x18] sm:$0xf]
    %v297 = vld [vmem:[%s289 + $0x1c] sm:$0xf]
    %v298 = vld [vmem:[%s289 + $0x20] sm:$0xf]
    %v299 = vld [vmem:[%s289 + $0x24] sm:$0xf]
    %v300 = vld [vmem:[%s289 + $0x28] sm:$0xf]
    %v301 = vld [vmem:[%s289 + $0x2c] sm:$0xf]
    %v302 = vld [vmem:[%s289 + $0x30] sm:$0xf]
    %v303 = vld [vmem:[%s289 + $0x34] sm:$0xf]
    %v304 = vld [vmem:[%s289 + $0x38] sm:$0xf]
    %v305 = vld [vmem:[%s289 + $0x3c] sm:$0xf]
    %s306 = scalar_lea.vmem %s4, 2
    %v307 = vld [vmem:[%s306] sm:$0x1]
    %v309 = vperm.slane %v307, 0
    %v327 = vunpack.c.l.b16 %v290
    %v328 = vunpack.c.l.b16 %v291
    %v329 = vunpack.c.l.b16 %v292
    %v330 = vunpack.c.l.b16 %v293
    %v331 = vunpack.c.l.b16 %v294
    %v332 = vunpack.c.l.b16 %v295
    %v333 = vunpack.c.l.b16 %v296
    %v334 = vunpack.c.l.b16 %v297
    %v335 = vunpack.c.l.b16 %v298
    %v336 = vunpack.c.l.b16 %v299
    %v337 = vunpack.c.l.b16 %v300
    %v338 = vunpack.c.l.b16 %v301
    %v339 = vunpack.c.l.b16 %v302
    %v340 = vunpack.c.l.b16 %v303
    %v341 = vunpack.c.l.b16 %v304
    %v342 = vunpack.c.l.b16 %v305
    %v343 = vpack.c.b16 %v328, %v327
    %v344 = vpack.c.b16 %v330, %v329
    %v345 = vpack.c.b16 %v332, %v331
    %v346 = vpack.c.b16 %v334, %v333
    %v347 = vpack.c.b16 %v336, %v335
    %v348 = vpack.c.b16 %v338, %v337
    %v349 = vpack.c.b16 %v340, %v339
    %v350 = vpack.c.b16 %v342, %v341
    %359 = vmatpush.bf16.msra.mxu0 %v350
    %360 = vmatpush.bf16.msra.mxu0 %v349
    %361 = vmatpush.bf16.msra.mxu0 %v348
    %362 = vmatpush.bf16.msra.mxu0 %v347
    %363 = vmatpush.bf16.msra.mxu0 %v346
    %364 = vmatpush.bf16.msra.mxu0 %v345
    %365 = vmatpush.bf16.msra.mxu0 %v344
    %366 = vmatpush.bf16.msra.mxu0 %v343
    %367 = vmatmul.bf16.gmra.mxu0 %v287
    %v368 = vpop.f32.mrf.mxu0
    %v369 = vadd.f32 %v309, %v368
    %v370 = vpop.f32.mrf.mxu0
    %v371 = vadd.f32 %v309, %v370
    %372 = vmatmul.bf16.gmra.mxu0 %v288
    %v373 = vpop.f32.mrf.mxu0
    %v374 = vadd.f32 %v309, %v373
    %v375 = vpop.f32.mrf.mxu0
    %v376 = vadd.f32 %v309, %v375
    %377 = vdwg.mxu0
    %v378 = vmax.f32 %v369, 0.0
    %v379 = vmax.f32 %v371, 0.0
    %v380 = vmax.f32 %v374, 0.0
    %v381 = vmax.f32 %v376, 0.0
    %v382 = vpack.c.bf16 %v379, %v378
    %v383 = vpack.c.bf16 %v381, %v380
    %s384 = scalar_lea.vmem [#allocation2], 192
    %v385 = vld [vmem:[%s384] sm:$0xf]
    %v386 = vld [vmem:[%s384 + $0x4] sm:$0xf]
    %v387 = vld [vmem:[%s384 + $0x8] sm:$0xf]
    %v388 = vld [vmem:[%s384 + $0xc] sm:$0xf]
    %v389 = vld [vmem:[%s384 + $0x10] sm:$0xf]
    %v390 = vld [vmem:[%s384 + $0x14] sm:$0xf]
    %v391 = vld [vmem:[%s384 + $0x18] sm:$0xf]
    %v392 = vld [vmem:[%s384 + $0x1c] sm:$0xf]
    %v393 = vld [vmem:[%s384 + $0x20] sm:$0xf]
    %v394 = vld [vmem:[%s384 + $0x24] sm:$0xf]
    %v395 = vld [vmem:[%s384 + $0x28] sm:$0xf]
    %v396 = vld [vmem:[%s384 + $0x2c] sm:$0xf]
    %v397 = vld [vmem:[%s384 + $0x30] sm:$0xf]
    %v398 = vld [vmem:[%s384 + $0x34] sm:$0xf]
    %v399 = vld [vmem:[%s384 + $0x38] sm:$0xf]
    %v400 = vld [vmem:[%s384 + $0x3c] sm:$0xf]
    %s401 = scalar_lea.vmem %s4, 3
    %v402 = vld [vmem:[%s401] sm:$0x1]
    %v404 = vperm.slane %v402, 0
    %v422 = vunpack.c.l.b16 %v385
    %v423 = vunpack.c.l.b16 %v386
    %v424 = vunpack.c.l.b16 %v387
    %v425 = vunpack.c.l.b16 %v388
    %v426 = vunpack.c.l.b16 %v389
    %v427 = vunpack.c.l.b16 %v390
    %v428 = vunpack.c.l.b16 %v391
    %v429 = vunpack.c.l.b16 %v392
    %v430 = vunpack.c.l.b16 %v393
    %v431 = vunpack.c.l.b16 %v394
    %v432 = vunpack.c.l.b16 %v395
    %v433 = vunpack.c.l.b16 %v396
    %v434 = vunpack.c.l.b16 %v397
    %v435 = vunpack.c.l.b16 %v398
    %v436 = vunpack.c.l.b16 %v399
    %v437 = vunpack.c.l.b16 %v400
    %v438 = vpack.c.b16 %v423, %v422
    %v439 = vpack.c.b16 %v425, %v424
    %v440 = vpack.c.b16 %v427, %v426
    %v441 = vpack.c.b16 %v429, %v428
    %v442 = vpack.c.b16 %v431, %v430
    %v443 = vpack.c.b16 %v433, %v432
    %v444 = vpack.c.b16 %v435, %v434
    %v445 = vpack.c.b16 %v437, %v436
    %454 = vmatpush.bf16.msra.mxu0 %v445
    %455 = vmatpush.bf16.msra.mxu0 %v444
    %456 = vmatpush.bf16.msra.mxu0 %v443
    %457 = vmatpush.bf16.msra.mxu0 %v442
    %458 = vmatpush.bf16.msra.mxu0 %v441
    %459 = vmatpush.bf16.msra.mxu0 %v440
    %460 = vmatpush.bf16.msra.mxu0 %v439
    %461 = vmatpush.bf16.msra.mxu0 %v438
    %462 = vmatmul.bf16.gmra.mxu0 %v382
    %v463 = vpop.f32.mrf.mxu0
    %v464 = vadd.f32 %v404, %v463
    %v465 = vpop.f32.mrf.mxu0
    %v466 = vadd.f32 %v404, %v465
    %467 = vmatmul.bf16.gmra.mxu0 %v383
    %v468 = vpop.f32.mrf.mxu0
    %v469 = vadd.f32 %v404, %v468
    %v470 = vpop.f32.mrf.mxu0
    %v471 = vadd.f32 %v404, %v470
    %472 = vdwg.mxu0
    %v473 = vmax.f32 %v464, 0.0
    %v474 = vmax.f32 %v466, 0.0
    %v475 = vmax.f32 %v469, 0.0
    %v476 = vmax.f32 %v471, 0.0
    %v477 = vpack.c.bf16 %v474, %v473
    %v478 = vpack.c.bf16 %v476, %v475
    %s479 = scalar_lea.vmem [#allocation2], 256
    %v480 = vld [vmem:[%s479] sm:$0xf]
    %v481 = vld [vmem:[%s479 + $0x4] sm:$0xf]
    %v482 = vld [vmem:[%s479 + $0x8] sm:$0xf]
    %v483 = vld [vmem:[%s479 + $0xc] sm:$0xf]
    %v484 = vld [vmem:[%s479 + $0x10] sm:$0xf]
    %v485 = vld [vmem:[%s479 + $0x14] sm:$0xf]
    %v486 = vld [vmem:[%s479 + $0x18] sm:$0xf]
    %v487 = vld [vmem:[%s479 + $0x1c] sm:$0xf]
    %v488 = vld [vmem:[%s479 + $0x20] sm:$0xf]
    %v489 = vld [vmem:[%s479 + $0x24] sm:$0xf]
    %v490 = vld [vmem:[%s479 + $0x28] sm:$0xf]
    %v491 = vld [vmem:[%s479 + $0x2c] sm:$0xf]
    %v492 = vld [vmem:[%s479 + $0x30] sm:$0xf]
    %v493 = vld [vmem:[%s479 + $0x34] sm:$0xf]
    %v494 = vld [vmem:[%s479 + $0x38] sm:$0xf]
    %v495 = vld [vmem:[%s479 + $0x3c] sm:$0xf]
    %s496 = scalar_lea.vmem %s4, 4
    %v497 = vld [vmem:[%s496] sm:$0x1]
    %v499 = vperm.slane %v497, 0
    %v517 = vunpack.c.l.b16 %v480
    %v518 = vunpack.c.l.b16 %v481
    %v519 = vunpack.c.l.b16 %v482
    %v520 = vunpack.c.l.b16 %v483
    %v521 = vunpack.c.l.b16 %v484
    %v522 = vunpack.c.l.b16 %v485
    %v523 = vunpack.c.l.b16 %v486
    %v524 = vunpack.c.l.b16 %v487
    %v525 = vunpack.c.l.b16 %v488
    %v526 = vunpack.c.l.b16 %v489
    %v527 = vunpack.c.l.b16 %v490
    %v528 = vunpack.c.l.b16 %v491
    %v529 = vunpack.c.l.b16 %v492
    %v530 = vunpack.c.l.b16 %v493
    %v531 = vunpack.c.l.b16 %v494
    %v532 = vunpack.c.l.b16 %v495
    %v533 = vpack.c.b16 %v518, %v517
    %v534 = vpack.c.b16 %v520, %v519
    %v535 = vpack.c.b16 %v522, %v521
    %v536 = vpack.c.b16 %v524, %v523
    %v537 = vpack.c.b16 %v526, %v525
    %v538 = vpack.c.b16 %v528, %v527
    %v539 = vpack.c.b16 %v530, %v529
    %v540 = vpack.c.b16 %v532, %v531
    %549 = vmatpush.bf16.msra.mxu0 %v540
    %550 = vmatpush.bf16.msra.mxu0 %v539
    %551 = vmatpush.bf16.msra.mxu0 %v538
    %552 = vmatpush.bf16.msra.mxu0 %v537
    %553 = vmatpush.bf16.msra.mxu0 %v536
    %554 = vmatpush.bf16.msra.mxu0 %v535
    %555 = vmatpush.bf16.msra.mxu0 %v534
    %556 = vmatpush.bf16.msra.mxu0 %v533
    %557 = vmatmul.bf16.gmra.mxu0 %v477
    %v558 = vpop.f32.mrf.mxu0
    %v559 = vadd.f32 %v499, %v558
    %v560 = vpop.f32.mrf.mxu0
    %v561 = vadd.f32 %v499, %v560
    %562 = vmatmul.bf16.gmra.mxu0 %v478
    %v563 = vpop.f32.mrf.mxu0
    %v564 = vadd.f32 %v499, %v563
    %v565 = vpop.f32.mrf.mxu0
    %v566 = vadd.f32 %v499, %v565
    %567 = vdwg.mxu0
    %v568 = vmax.f32 %v559, 0.0
    %v569 = vmax.f32 %v561, 0.0
    %v570 = vmax.f32 %v564, 0.0
    %v571 = vmax.f32 %v566, 0.0
    %v572 = vpack.c.bf16 %v569, %v568
    %v573 = vpack.c.bf16 %v571, %v570
    %s574 = scalar_lea.vmem [#allocation2], 320
    %v575 = vld [vmem:[%s574] sm:$0xf]
    %v576 = vld [vmem:[%s574 + $0x4] sm:$0xf]
    %v577 = vld [vmem:[%s574 + $0x8] sm:$0xf]
    %v578 = vld [vmem:[%s574 + $0xc] sm:$0xf]
    %v579 = vld [vmem:[%s574 + $0x10] sm:$0xf]
    %v580 = vld [vmem:[%s574 + $0x14] sm:$0xf]
    %v581 = vld [vmem:[%s574 + $0x18] sm:$0xf]
    %v582 = vld [vmem:[%s574 + $0x1c] sm:$0xf]
    %v583 = vld [vmem:[%s574 + $0x20] sm:$0xf]
    %v584 = vld [vmem:[%s574 + $0x24] sm:$0xf]
    %v585 = vld [vmem:[%s574 + $0x28] sm:$0xf]
    %v586 = vld [vmem:[%s574 + $0x2c] sm:$0xf]
    %v587 = vld [vmem:[%s574 + $0x30] sm:$0xf]
    %v588 = vld [vmem:[%s574 + $0x34] sm:$0xf]
    %v589 = vld [vmem:[%s574 + $0x38] sm:$0xf]
    %v590 = vld [vmem:[%s574 + $0x3c] sm:$0xf]
    %s591 = scalar_lea.vmem %s4, 5
    %v592 = vld [vmem:[%s591] sm:$0x1]
    %v594 = vperm.slane %v592, 0
    %v612 = vunpack.c.l.b16 %v575
    %v613 = vunpack.c.l.b16 %v576
    %v614 = vunpack.c.l.b16 %v577
    %v615 = vunpack.c.l.b16 %v578
    %v616 = vunpack.c.l.b16 %v579
    %v617 = vunpack.c.l.b16 %v580
    %v618 = vunpack.c.l.b16 %v581
    %v619 = vunpack.c.l.b16 %v582
    %v620 = vunpack.c.l.b16 %v583
    %v621 = vunpack.c.l.b16 %v584
    %v622 = vunpack.c.l.b16 %v585
    %v623 = vunpack.c.l.b16 %v586
    %v624 = vunpack.c.l.b16 %v587
    %v625 = vunpack.c.l.b16 %v588
    %v626 = vunpack.c.l.b16 %v589
    %v627 = vunpack.c.l.b16 %v590
    %v628 = vpack.c.b16 %v613, %v612
    %v629 = vpack.c.b16 %v615, %v614
    %v630 = vpack.c.b16 %v617, %v616
    %v631 = vpack.c.b16 %v619, %v618
    %v632 = vpack.c.b16 %v621, %v620
    %v633 = vpack.c.b16 %v623, %v622
    %v634 = vpack.c.b16 %v625, %v624
    %v635 = vpack.c.b16 %v627, %v626
    %644 = vmatpush.bf16.msra.mxu0 %v635
    %645 = vmatpush.bf16.msra.mxu0 %v634
    %646 = vmatpush.bf16.msra.mxu0 %v633
    %647 = vmatpush.bf16.msra.mxu0 %v632
    %648 = vmatpush.bf16.msra.mxu0 %v631
    %649 = vmatpush.bf16.msra.mxu0 %v630
    %650 = vmatpush.bf16.msra.mxu0 %v629
    %651 = vmatpush.bf16.msra.mxu0 %v628
    %652 = vmatmul.bf16.gmra.mxu0 %v572
    %v653 = vpop.f32.mrf.mxu0
    %v654 = vadd.f32 %v594, %v653
    %v655 = vpop.f32.mrf.mxu0
    %v656 = vadd.f32 %v594, %v655
    %657 = vmatmul.bf16.gmra.mxu0 %v573
    %v658 = vpop.f32.mrf.mxu0
    %v659 = vadd.f32 %v594, %v658
    %v660 = vpop.f32.mrf.mxu0
    %v661 = vadd.f32 %v594, %v660
    %662 = vdwg.mxu0
    %v663 = vmax.f32 %v654, 0.0
    %v664 = vmax.f32 %v656, 0.0
    %v665 = vmax.f32 %v659, 0.0
    %v666 = vmax.f32 %v661, 0.0
    %v667 = vpack.c.bf16 %v664, %v663
    %v668 = vpack.c.bf16 %v666, %v665
    %v669 = vld [vmem:[%s5] sm:$0xf]
    %v670 = vld [vmem:[%s5 + $0x4] sm:$0xf]
    %v671 = vld [vmem:[%s5 + $0x8] sm:$0xf]
    %v672 = vld [vmem:[%s5 + $0xc] sm:$0xf]
    %v673 = vld [vmem:[%s5 + $0x10] sm:$0xf]
    %v674 = vld [vmem:[%s5 + $0x14] sm:$0xf]
    %v675 = vld [vmem:[%s5 + $0x18] sm:$0xf]
    %v676 = vld [vmem:[%s5 + $0x1c] sm:$0xf]
    %v677 = vld [vmem:[%s5 + $0x20] sm:$0xf]
    %v678 = vld [vmem:[%s5 + $0x24] sm:$0xf]
    %v679 = vld [vmem:[%s5 + $0x28] sm:$0xf]
    %v680 = vld [vmem:[%s5 + $0x2c] sm:$0xf]
    %v681 = vld [vmem:[%s5 + $0x30] sm:$0xf]
    %v682 = vld [vmem:[%s5 + $0x34] sm:$0xf]
    %v683 = vld [vmem:[%s5 + $0x38] sm:$0xf]
    %v684 = vld [vmem:[%s5 + $0x3c] sm:$0xf]
    %v685 = vld [vmem:[%s6] sm:$0x1]
    %v687 = vperm.slane %v685, 0
    %v705 = vunpack.c.l.b16 %v669
    %v706 = vunpack.c.l.b16 %v670
    %v707 = vunpack.c.l.b16 %v671
    %v708 = vunpack.c.l.b16 %v672
    %v709 = vunpack.c.l.b16 %v673
    %v710 = vunpack.c.l.b16 %v674
    %v711 = vunpack.c.l.b16 %v675
    %v712 = vunpack.c.l.b16 %v676
    %v713 = vunpack.c.l.b16 %v677
    %v714 = vunpack.c.l.b16 %v678
    %v715 = vunpack.c.l.b16 %v679
    %v716 = vunpack.c.l.b16 %v680
    %v717 = vunpack.c.l.b16 %v681
    %v718 = vunpack.c.l.b16 %v682
    %v719 = vunpack.c.l.b16 %v683
    %v720 = vunpack.c.l.b16 %v684
    %v721 = vpack.c.b16 %v706, %v705
    %v722 = vpack.c.b16 %v708, %v707
    %v723 = vpack.c.b16 %v710, %v709
    %v724 = vpack.c.b16 %v712, %v711
    %v725 = vpack.c.b16 %v714, %v713
    %v726 = vpack.c.b16 %v716, %v715
    %v727 = vpack.c.b16 %v718, %v717
    %v728 = vpack.c.b16 %v720, %v719
    %737 = vmatpush.bf16.msra.mxu0 %v728
    %738 = vmatpush.bf16.msra.mxu0 %v727
    %739 = vmatpush.bf16.msra.mxu0 %v726
    %740 = vmatpush.bf16.msra.mxu0 %v725
    %741 = vmatpush.bf16.msra.mxu0 %v724
    %742 = vmatpush.bf16.msra.mxu0 %v723
    %743 = vmatpush.bf16.msra.mxu0 %v722
    %744 = vmatpush.bf16.msra.mxu0 %v721
    %745 = vmatmul.bf16.gmra.mxu0 %v667
    %v746 = vpop.f32.mrf.mxu0
    %v747 = vadd.f32 %v687, %v746
    %v748 = vpop.f32.mrf.mxu0
    %v749 = vadd.f32 %v687, %v748
    %750 = vmatmul.bf16.gmra.mxu0 %v668
    %v751 = vpop.f32.mrf.mxu0
    %v752 = vadd.f32 %v687, %v751
    %v753 = vpop.f32.mrf.mxu0
    %v754 = vadd.f32 %v687, %v753
    %755 = vdwg.mxu0
    %vm756 = vcmask 64512
    %757 = vst.msk [vmem:[%s7] sm:$0xff] %vm756, %v747
    %758 = vst.msk [vmem:[%s7 + $0x8] sm:$0xff] %vm756, %v749
    %759 = vst.msk [vmem:[%s7 + $0x10] sm:$0xff] %vm756, %v752
    %760 = vst.msk [vmem:[%s7 + $0x18] sm:$0xff] %vm756, %v754
    // Predicated region
    $region34: #{tpu_custom_call.1} parent=1 // pred_check
      _
    $region35: #{tpu_custom_call.1} parent=1 // pred_check_branch
      %762 = sbr.rel (0) target = $region37
    $region36: #{tpu_custom_call.1} parent=1 // pred_region
      _
    $region37: #{tpu_custom_call.1} parent=1 // pred_fallthru
      _
    // Predicated region
    $region38: #{tpu_custom_call.1} parent=1 // pred_check
      _
    $region39: #{tpu_custom_call.1} parent=1 // pred_check_branch
      %764 = sbr.rel (0) target = $region41
    $region40: #{tpu_custom_call.1} parent=1 // pred_region
      _
    $region41: #{tpu_custom_call.1} parent=1 // pred_fallthru
      _
    %765 = vsyncpa [#allocation3], 1

</llo_original>
